<compile_context>
chip_gen: v7x
topology: tpu7x:2x2x1
jax: 0.10.0
libtpu: 0.0.40
codegen_flags: <defaults>
</compile_context>

<pallas_src>
import jax
import jax.numpy as jnp
from jax import lax
from jax.experimental import pallas as pl
from jax.experimental.pallas import tpu as pltpu  # noqa: F401  (TPU backend)

# ---------------- config (stands in for config.json) ----------------
D_MODEL = 128
BLOCK_LENGTH = 16
BATCH = 2
FF_HIDDEN = 4 * D_MODEL


# ---------------- Pallas kernel ----------------
def ffn_kernel(x_ref, w1_ref, w2_ref, o_ref):
    """Fused FeedForward: out = relu(x @ w1.T) @ w2.T.

    x_ref:  (M, D)   flattened activations (M = B*T)
    w1_ref: (4D, D)  ffw1 weight, PyTorch nn.Linear layout (out, in)
    w2_ref: (D, 4D)  ffw2 weight, PyTorch nn.Linear layout (out, in)
    o_ref:  (M, D)
    """
    x = x_ref[...]
    # x @ w1.T : contract x dim 1 with w1 dim 1 -> (M, 4D); MXU handles the
    # transposed RHS, no explicit XLU transpose.
    h = lax.dot_general(x, w1_ref[...], (((1,), (1,)), ((), ())),
                        preferred_element_type=jnp.float32)
    h = jnp.maximum(h, 0.0)
    # h @ w2.T : (M, 4D) x (D, 4D)^T -> (M, D)
    o = lax.dot_general(h, w2_ref[...], (((1,), (1,)), ((), ())),
                        preferred_element_type=jnp.float32)
    o_ref[...] = o.astype(o_ref.dtype)


# ---------------- wrapper ----------------
def feed_forward(x, w1, w2):
    """x: (..., D) float32. w1: (4D, D), w2: (D, 4D) in PyTorch layout."""
    orig_shape = x.shape
    D = orig_shape[-1]
    H = w1.shape[0]
    x2d = x.reshape(-1, D)
    M = x2d.shape[0]

    # Pad rows up to a sublane multiple (8) if needed; 32 rows already aligned.
    Mp = ((M + 7) // 8) * 8
    if Mp != M:
        x2d = jnp.pad(x2d, ((0, Mp - M), (0, 0)))

    out = pl.pallas_call(
        ffn_kernel,
        out_shape=jax.ShapeDtypeStruct((Mp, D), x.dtype),
        in_specs=[
            pl.BlockSpec((Mp, D), lambda: (0, 0)),
            pl.BlockSpec((H, D), lambda: (0, 0)),
            pl.BlockSpec((D, H), lambda: (0, 0)),
        ],
        out_specs=pl.BlockSpec((Mp, D), lambda: (0, 0)),
    )(x2d, w1, w2)

    return out[:M].reshape(orig_shape)


# ---------------- pure-JAX reference ----------------
def reference_feed_forward(x, w1, w2):
    return jnp.maximum(x @ w1.T, 0.0) @ w2.T


if __name__ == "__main__":
    key = jax.random.PRNGKey(0)
    kx, k1, k2 = jax.random.split(key, 3)

    # Activations shaped like the surrounding transformer: (batch, seq, d_model)
    x = jax.random.normal(kx, (BATCH, BLOCK_LENGTH, D_MODEL), jnp.float32)
    # nn.Linear(bias=False) weights in PyTorch (out_features, in_features) layout.
    w1 = jax.random.normal(k1, (FF_HIDDEN, D_MODEL), jnp.float32) * 0.05
    w2 = jax.random.normal(k2, (D_MODEL, FF_HIDDEN), jnp.float32) * 0.05

    out = jax.block_until_ready(feed_forward(x, w1, w2))
    assert out.shape == (BATCH, BLOCK_LENGTH, D_MODEL)
    assert bool(jnp.all(jnp.isfinite(out)))

    ref = jax.block_until_ready(reference_feed_forward(x, w1, w2))
    max_err = float(jnp.max(jnp.abs(out - ref)))
    assert bool(jnp.allclose(out, ref, atol=1e-4, rtol=1e-4)), max_err

    print("KERNEL_OK")
</pallas_src>

<mosaic_0001>
module attributes {stable_mosaic.version = 11 : i64} {
  func.func @ffn_kernel(%arg0: memref<32x128xf32, #tpu.memory_space<vmem>>, %arg1: memref<512x128xf32, #tpu.memory_space<vmem>>, %arg2: memref<128x512xf32, #tpu.memory_space<vmem>>, %arg3: memref<32x128xf32, #tpu.memory_space<vmem>>) attributes {dimension_semantics = [], scalar_prefetch = 0 : i64, scratch_operands = 0 : i64, tpu.core_type = #tpu.core_type<tc>} {
    %c0 = arith.constant 0 : index
    %c0_0 = arith.constant 0 : index
    %0 = vector.load %arg0[%c0, %c0_0] : memref<32x128xf32, #tpu.memory_space<vmem>>, vector<32x128xf32>
    %c0_1 = arith.constant 0 : index
    %c0_2 = arith.constant 0 : index
    %1 = vector.load %arg1[%c0_1, %c0_2] : memref<512x128xf32, #tpu.memory_space<vmem>>, vector<512x128xf32>
    %cst = arith.constant dense<0.000000e+00> : vector<32x512xf32>
    %2 = tpu.matmul %0, %1, %cst {dimension_numbers = #tpu.dot_dimension_numbers<[1], [1], [0], [0], [0, 0, 1, 0], [], []>} : vector<32x128xf32>, vector<512x128xf32>, vector<32x512xf32> -> vector<32x512xf32>
    %cst_3 = arith.constant 0.000000e+00 : f32
    %3 = vector.broadcast %cst_3 : f32 to vector<32x512xf32>
    %4 = arith.maximumf %2, %3 : vector<32x512xf32>
    %c0_4 = arith.constant 0 : index
    %c0_5 = arith.constant 0 : index
    %5 = vector.load %arg2[%c0_4, %c0_5] : memref<128x512xf32, #tpu.memory_space<vmem>>, vector<128x512xf32>
    %cst_6 = arith.constant dense<0.000000e+00> : vector<32x128xf32>
    %6 = tpu.matmul %4, %5, %cst_6 {dimension_numbers = #tpu.dot_dimension_numbers<[1], [1], [0], [0], [0, 0, 1, 0], [], []>} : vector<32x512xf32>, vector<128x512xf32>, vector<32x128xf32> -> vector<32x128xf32>
    %c0_7 = arith.constant 0 : index
    %c0_8 = arith.constant 0 : index
    %7 = vector.load %arg3[%c0_7, %c0_8] : memref<32x128xf32, #tpu.memory_space<vmem>>, vector<32x128xf32>
    tpu.vector_store %arg3[%c0_7, %c0_8], %6 {strides = array<i32>} : memref<32x128xf32, #tpu.memory_space<vmem>>, vector<32x128xf32>,
    return
  }
}

</mosaic_0001>

<llo_original>
// kernel: tpu_custom_call.1
$region0: #{tpu_custom_call.1}
  #allocation0 [shape = 'u32[]', space=smem, size = 0x4, offset = 0x4, fixed_abs, tag = 'smem constant byte address 0x4 - core index']
  #allocation1 [shape = 'u32[144,128]{1,0:T(1,128)}', space=vmem, size = 0x12000, scoped, tag = 'internal scratch']
  %s0 = inlined_call_operand.hbm [shape: f32[32,128], index: 0, kind: input, shape index: {}]
  %s1 = inlined_call_operand.hbm [shape: f32[512,128], index: 1, kind: input, shape index: {}]
  %s2 = inlined_call_operand.hbm [shape: f32[128,512], index: 2, kind: input, shape index: {}]
  %s3 = inlined_call_operand.hbm [shape: f32[32,128], index: 3, kind: output, shape index: {}]
  %s4 = sld [smem:[#allocation0]]
  $region34: #{tpu_custom_call.1} parent=0
    _
  %s6 = ssub.s32 1, %s4
  %s7 = scalar_select 0, %s6, %s4
  $region1: #{tpu_custom_call.1} parent=0
    #allocation2 [shape = 'u8[16384]{0}', space=vmem, size = 0x4000, scoped, tag = 'input window, operand 0, single buffered']
    #allocation3 [shape = 's32[1]{0}', space=sflag, size = 0x4, scoped, tag = 'scoped memory for tpu_custom_call.1']
    #allocation4 [shape = 's32[1]{0}', space=sflag, size = 0x4, scoped, tag = 'scoped memory for tpu_custom_call.1']
    #allocation5 [shape = 'u8[262144]{0}', space=vmem, size = 0x40000, scoped, tag = 'input window, operand 1, single buffered']
    #allocation6 [shape = 's32[1]{0}', space=sflag, size = 0x4, scoped, tag = 'scoped memory for tpu_custom_call.1']
    #allocation7 [shape = 'u8[262144]{0}', space=vmem, size = 0x40000, scoped, tag = 'input window, operand 2, single buffered']
    #allocation8 [shape = 'u8[16384]{0}', space=vmem, size = 0x4000, scoped, tag = 'output window, operand 0, single buffered']
    %8 = vsyncpa [#allocation3], 0
    %9 = vsyncpa [#allocation6], 0
    %10 = vsyncpa [#allocation4], 0
    // Predicated region
    $region2: #{tpu_custom_call.1} parent=1 // pred_check
      _
    $region3: #{tpu_custom_call.1} parent=1 // pred_check_branch
      %12 = sbr.rel (0) target = $region5
    $region4: #{tpu_custom_call.1} parent=1 // pred_region
      %s14 = ssub.s32 512, 512
      %15 = vsyncadd [#allocation3], %s14
      %s16 = sshll.u32 [#allocation2], 4
      %s17 = int_to_ptr.vmem [resolvable:$true] %s16
      %22 = dma.hbm_to_vmem [thread:$0]  %s0, 512, %s17, [#allocation3], 128, 128, 8
    $region5: #{tpu_custom_call.1} parent=1 // pred_fallthru
      _
    // Predicated region
    $region6: #{tpu_custom_call.1} parent=1 // pred_check
      _
    $region7: #{tpu_custom_call.1} parent=1 // pred_check_branch
      %24 = sbr.rel (0) target = $region9
    $region8: #{tpu_custom_call.1} parent=1 // pred_region
      %s26 = ssub.s32 8192, 8192
      %27 = vsyncadd [#allocation6], %s26
      %s28 = sshll.u32 [#allocation5], 4
      %s29 = int_to_ptr.vmem [resolvable:$true] %s28
      %34 = dma.hbm_to_vmem [thread:$0]  %s1, 8192, %s29, [#allocation6], 128, 128, 8
    $region9: #{tpu_custom_call.1} parent=1 // pred_fallthru
      _
    // Predicated region
    $region10: #{tpu_custom_call.1} parent=1 // pred_check
      _
    $region11: #{tpu_custom_call.1} parent=1 // pred_check_branch
      %36 = sbr.rel (0) target = $region13
    $region12: #{tpu_custom_call.1} parent=1 // pred_region
      %s38 = ssub.s32 8192, 8192
      %39 = vsyncadd [#allocation6], %s38
      %s40 = sshll.u32 [#allocation7], 4
      %s41 = int_to_ptr.vmem [resolvable:$true] %s40
      %46 = dma.hbm_to_vmem [thread:$0]  %s2, 8192, %s41, [#allocation6], 512, 512, 32
    $region13: #{tpu_custom_call.1} parent=1 // pred_fallthru
      _
    // Predicated region
    $region14: #{tpu_custom_call.1} parent=1 // pred_check
      _
    $region15: #{tpu_custom_call.1} parent=1 // pred_check_branch
      %48 = sbr.rel (0) target = $region17
    $region16: #{tpu_custom_call.1} parent=1 // pred_region
      %49 = dma.done [#allocation3], 512
    $region17: #{tpu_custom_call.1} parent=1 // pred_fallthru
      _
    // Predicated region
    $region18: #{tpu_custom_call.1} parent=1 // pred_check
      _
    $region19: #{tpu_custom_call.1} parent=1 // pred_check_branch
      %51 = sbr.rel (0) target = $region21
    $region20: #{tpu_custom_call.1} parent=1 // pred_region
      %52 = dma.done [#allocation6], 8192
    $region21: #{tpu_custom_call.1} parent=1 // pred_fallthru
      _
    // Predicated region
    $region22: #{tpu_custom_call.1} parent=1 // pred_check
      _
    $region23: #{tpu_custom_call.1} parent=1 // pred_check_branch
      %54 = sbr.rel (0) target = $region25
    $region24: #{tpu_custom_call.1} parent=1 // pred_region
      %55 = dma.done [#allocation6], 8192
    $region25: #{tpu_custom_call.1} parent=1 // pred_fallthru
      _
    %v56 = vld [vmem:[#allocation2] sm:$0xff]
    %v57 = vld [vmem:[#allocation2 + $0x8] sm:$0xff]
    %v58 = vld [vmem:[#allocation2 + $0x10] sm:$0xff]
    %v59 = vld [vmem:[#allocation2 + $0x18] sm:$0xff]
    %v60 = vld [vmem:[#allocation5] sm:$0xff]
    %v61 = vld [vmem:[#allocation5 + $0x8] sm:$0xff]
    %v62 = vld [vmem:[#allocation5 + $0x10] sm:$0xff]
    %v63 = vld [vmem:[#allocation5 + $0x18] sm:$0xff]
    %v64 = vld [vmem:[#allocation5 + $0x20] sm:$0xff]
    %v65 = vld [vmem:[#allocation5 + $0x28] sm:$0xff]
    %v66 = vld [vmem:[#allocation5 + $0x30] sm:$0xff]
    %v67 = vld [vmem:[#allocation5 + $0x38] sm:$0xff]
    %v68 = vld [vmem:[#allocation5 + $0x40] sm:$0xff]
    %v69 = vld [vmem:[#allocation5 + $0x48] sm:$0xff]
    %v70 = vld [vmem:[#allocation5 + $0x50] sm:$0xff]
    %v71 = vld [vmem:[#allocation5 + $0x58] sm:$0xff]
    %v72 = vld [vmem:[#allocation5 + $0x60] sm:$0xff]
    %v73 = vld [vmem:[#allocation5 + $0x68] sm:$0xff]
    %v74 = vld [vmem:[#allocation5 + $0x70] sm:$0xff]
    %v75 = vld [vmem:[#allocation5 + $0x78] sm:$0xff]
    %v76 = vld [vmem:[#allocation5 + $0x80] sm:$0xff]
    %v77 = vld [vmem:[#allocation5 + $0x88] sm:$0xff]
    %v78 = vld [vmem:[#allocation5 + $0x90] sm:$0xff]
    %v79 = vld [vmem:[#allocation5 + $0x98] sm:$0xff]
    %v80 = vld [vmem:[#allocation5 + $0xa0] sm:$0xff]
    %v81 = vld [vmem:[#allocation5 + $0xa8] sm:$0xff]
    %v82 = vld [vmem:[#allocation5 + $0xb0] sm:$0xff]
    %v83 = vld [vmem:[#allocation5 + $0xb8] sm:$0xff]
    %v84 = vld [vmem:[#allocation5 + $0xc0] sm:$0xff]
    %v85 = vld [vmem:[#allocation5 + $0xc8] sm:$0xff]
    %v86 = vld [vmem:[#allocation5 + $0xd0] sm:$0xff]
    %v87 = vld [vmem:[#allocation5 + $0xd8] sm:$0xff]
    %v88 = vld [vmem:[#allocation5 + $0xe0] sm:$0xff]
    %v89 = vld [vmem:[#allocation5 + $0xe8] sm:$0xff]
    %v90 = vld [vmem:[#allocation5 + $0xf0] sm:$0xff]
    %v91 = vld [vmem:[#allocation5 + $0xf8] sm:$0xff]
    %v92 = vld [vmem:[#allocation5 + $0x100] sm:$0xff]
    %v93 = vld [vmem:[#allocation5 + $0x108] sm:$0xff]
    %v94 = vld [vmem:[#allocation5 + $0x110] sm:$0xff]
    %v95 = vld [vmem:[#allocation5 + $0x118] sm:$0xff]
    %v96 = vld [vmem:[#allocation5 + $0x120] sm:$0xff]
    %v97 = vld [vmem:[#allocation5 + $0x128] sm:$0xff]
    %v98 = vld [vmem:[#allocation5 + $0x130] sm:$0xff]
    %v99 = vld [vmem:[#allocation5 + $0x138] sm:$0xff]
    %v100 = vld [vmem:[#allocation5 + $0x140] sm:$0xff]
    %v101 = vld [vmem:[#allocation5 + $0x148] sm:$0xff]
    %v102 = vld [vmem:[#allocation5 + $0x150] sm:$0xff]
    %v103 = vld [vmem:[#allocation5 + $0x158] sm:$0xff]
    %v104 = vld [vmem:[#allocation5 + $0x160] sm:$0xff]
    %v105 = vld [vmem:[#allocation5 + $0x168] sm:$0xff]
    %v106 = vld [vmem:[#allocation5 + $0x170] sm:$0xff]
    %v107 = vld [vmem:[#allocation5 + $0x178] sm:$0xff]
    %v108 = vld [vmem:[#allocation5 + $0x180] sm:$0xff]
    %v109 = vld [vmem:[#allocation5 + $0x188] sm:$0xff]
    %v110 = vld [vmem:[#allocation5 + $0x190] sm:$0xff]
    %v111 = vld [vmem:[#allocation5 + $0x198] sm:$0xff]
    %v112 = vld [vmem:[#allocation5 + $0x1a0] sm:$0xff]
    %v113 = vld [vmem:[#allocation5 + $0x1a8] sm:$0xff]
    %v114 = vld [vmem:[#allocation5 + $0x1b0] sm:$0xff]
    %v115 = vld [vmem:[#allocation5 + $0x1b8] sm:$0xff]
    %v116 = vld [vmem:[#allocation5 + $0x1c0] sm:$0xff]
    %v117 = vld [vmem:[#allocation5 + $0x1c8] sm:$0xff]
    %v118 = vld [vmem:[#allocation5 + $0x1d0] sm:$0xff]
    %v119 = vld [vmem:[#allocation5 + $0x1d8] sm:$0xff]
    %v120 = vld [vmem:[#allocation5 + $0x1e0] sm:$0xff]
    %v121 = vld [vmem:[#allocation5 + $0x1e8] sm:$0xff]
    %v122 = vld [vmem:[#allocation5 + $0x1f0] sm:$0xff]
    %v123 = vld [vmem:[#allocation5 + $0x1f8] sm:$0xff]
    %124 = vmatprep.subr.mxu0 0.0
    %125 = vmatpush1.xpose.msra.mxu0 %v60
    %126 = vmatprep.subr.mxu0 0.0
    %127 = vmatpush1.xpose.msra.mxu0 %v61
    %128 = vmatprep.subr.mxu0 0.0
    %129 = vmatpush1.xpose.msra.mxu0 %v62
    %130 = vmatprep.subr.mxu0 0.0
    %131 = vmatpush1.xpose.msra.mxu0 %v63
    %132 = vmatprep.subr.mxu0 0.0
    %133 = vmatpush1.xpose.msra.mxu0 %v64
    %134 = vmatprep.subr.mxu0 0.0
    %135 = vmatpush1.xpose.msra.mxu0 %v65
    %136 = vmatprep.subr.mxu0 0.0
    %137 = vmatpush1.xpose.msra.mxu0 %v66
    %138 = vmatprep.subr.mxu0 0.0
    %139 = vmatpush1.xpose.msra.mxu0 %v67
    %140 = vmatprep.subr.mxu0 0.0
    %141 = vmatpush1.xpose.msra.mxu0 %v68
    %142 = vmatprep.subr.mxu0 0.0
    %143 = vmatpush1.xpose.msra.mxu0 %v69
    %144 = vmatprep.subr.mxu0 0.0
    %145 = vmatpush1.xpose.msra.mxu0 %v70
    %146 = vmatprep.subr.mxu0 0.0
    %147 = vmatpush1.xpose.msra.mxu0 %v71
    %148 = vmatprep.subr.mxu0 0.0
    %149 = vmatpush1.xpose.msra.mxu0 %v72
    %150 = vmatprep.subr.mxu0 0.0
    %151 = vmatpush1.xpose.msra.mxu0 %v73
    %152 = vmatprep.subr.mxu0 0.0
    %153 = vmatpush1.xpose.msra.mxu0 %v74
    %154 = vmatprep.subr.mxu0 0.0
    %155 = vmatpush1.xpose.msra.mxu0 %v75
    %156 = vmatprep.subr.mxu0 0.0
    %157 = vmatpush1.xpose.msra.mxu0 %v76
    %158 = vmatprep.subr.mxu0 0.0
    %159 = vmatpush1.xpose.msra.mxu0 %v77
    %160 = vmatprep.subr.mxu0 0.0
    %161 = vmatpush1.xpose.msra.mxu0 %v78
    %162 = vmatprep.subr.mxu0 0.0
    %163 = vmatpush1.xpose.msra.mxu0 %v79
    %164 = vmatprep.subr.mxu0 0.0
    %165 = vmatpush1.xpose.msra.mxu0 %v80
    %166 = vmatprep.subr.mxu0 0.0
    %167 = vmatpush1.xpose.msra.mxu0 %v81
    %168 = vmatprep.subr.mxu0 0.0
    %169 = vmatpush1.xpose.msra.mxu0 %v82
    %170 = vmatprep.subr.mxu0 0.0
    %171 = vmatpush1.xpose.msra.mxu0 %v83
    %172 = vmatprep.subr.mxu0 0.0
    %173 = vmatpush1.xpose.msra.mxu0 %v84
    %174 = vmatprep.subr.mxu0 0.0
    %175 = vmatpush1.xpose.msra.mxu0 %v85
    %176 = vmatprep.subr.mxu0 0.0
    %177 = vmatpush1.xpose.msra.mxu0 %v86
    %178 = vmatprep.subr.mxu0 0.0
    %179 = vmatpush1.xpose.msra.mxu0 %v87
    %180 = vmatprep.subr.mxu0 0.0
    %181 = vmatpush1.xpose.msra.mxu0 %v88
    %182 = vmatprep.subr.mxu0 0.0
    %183 = vmatpush1.xpose.msra.mxu0 %v89
    %184 = vmatprep.subr.mxu0 0.0
    %185 = vmatpush1.xpose.msra.mxu0 %v90
    %186 = vmatprep.subr.mxu0 0.0
    %187 = vmatpush1.xpose.msra.mxu0 %v91
    %188 = vmatprep.mubr.f32.mxu0 0.0
    %189 = vmatmul.mubr.f32.gmra.mrb[0].mxu0 %v56
    %v190 = vpop.f32.mrb[0].mxu0
    %v191 = vadd.f32 0.0, %v190
    %v192 = vpop.f32.mrb[0].mxu0
    %v193 = vadd.f32 0.0, %v192
    %194 = vmatprep.mubr.f32.mxu0 0.0
    %195 = vmatmul.mubr.f32.gmra.mrb[0].mxu0 %v57
    %v196 = vpop.f32.mrb[0].mxu0
    %v197 = vadd.f32 0.0, %v196
    %v198 = vpop.f32.mrb[0].mxu0
    %v199 = vadd.f32 0.0, %v198
    %200 = vmatprep.mubr.f32.mxu0 0.0
    %201 = vmatmul.mubr.f32.gmra.mrb[0].mxu0 %v58
    %v202 = vpop.f32.mrb[0].mxu0
    %v203 = vadd.f32 0.0, %v202
    %v204 = vpop.f32.mrb[0].mxu0
    %v205 = vadd.f32 0.0, %v204
    %206 = vmatprep.mubr.f32.mxu0 0.0
    %207 = vmatmul.mubr.f32.gmra.mrb[0].mxu0 %v59
    %v208 = vpop.f32.mrb[0].mxu0
    %v209 = vadd.f32 0.0, %v208
    %v210 = vpop.f32.mrb[0].mxu0
    %v211 = vadd.f32 0.0, %v210
    %212 = vdwg.mxu0
    %213 = vmatprep.subr.mxu0 0.0
    %214 = vmatpush1.xpose.msra.mxu0 %v92
    %215 = vmatprep.subr.mxu0 0.0
    %216 = vmatpush1.xpose.msra.mxu0 %v93
    %217 = vmatprep.subr.mxu0 0.0
    %218 = vmatpush1.xpose.msra.mxu0 %v94
    %219 = vmatprep.subr.mxu0 0.0
    %220 = vmatpush1.xpose.msra.mxu0 %v95
    %221 = vmatprep.subr.mxu0 0.0
    %222 = vmatpush1.xpose.msra.mxu0 %v96
    %223 = vmatprep.subr.mxu0 0.0
    %224 = vmatpush1.xpose.msra.mxu0 %v97
    %225 = vmatprep.subr.mxu0 0.0
    %226 = vmatpush1.xpose.msra.mxu0 %v98
    %227 = vmatprep.subr.mxu0 0.0
    %228 = vmatpush1.xpose.msra.mxu0 %v99
    %229 = vmatprep.subr.mxu0 0.0
    %230 = vmatpush1.xpose.msra.mxu0 %v100
    %231 = vmatprep.subr.mxu0 0.0
    %232 = vmatpush1.xpose.msra.mxu0 %v101
    %233 = vmatprep.subr.mxu0 0.0
    %234 = vmatpush1.xpose.msra.mxu0 %v102
    %235 = vmatprep.subr.mxu0 0.0
    %236 = vmatpush1.xpose.msra.mxu0 %v103
    %237 = vmatprep.subr.mxu0 0.0
    %238 = vmatpush1.xpose.msra.mxu0 %v104
    %239 = vmatprep.subr.mxu0 0.0
    %240 = vmatpush1.xpose.msra.mxu0 %v105
    %241 = vmatprep.subr.mxu0 0.0
    %242 = vmatpush1.xpose.msra.mxu0 %v106
    %243 = vmatprep.subr.mxu0 0.0
    %244 = vmatpush1.xpose.msra.mxu0 %v107
    %245 = vmatprep.subr.mxu0 0.0
    %246 = vmatpush1.xpose.msra.mxu0 %v108
    %247 = vmatprep.subr.mxu0 0.0
    %248 = vmatpush1.xpose.msra.mxu0 %v109
    %249 = vmatprep.subr.mxu0 0.0
    %250 = vmatpush1.xpose.msra.mxu0 %v110
    %251 = vmatprep.subr.mxu0 0.0
    %252 = vmatpush1.xpose.msra.mxu0 %v111
    %253 = vmatprep.subr.mxu0 0.0
    %254 = vmatpush1.xpose.msra.mxu0 %v112
    %255 = vmatprep.subr.mxu0 0.0
    %256 = vmatpush1.xpose.msra.mxu0 %v113
    %257 = vmatprep.subr.mxu0 0.0
    %258 = vmatpush1.xpose.msra.mxu0 %v114
    %259 = vmatprep.subr.mxu0 0.0
    %260 = vmatpush1.xpose.msra.mxu0 %v115
    %261 = vmatprep.subr.mxu0 0.0
    %262 = vmatpush1.xpose.msra.mxu0 %v116
    %263 = vmatprep.subr.mxu0 0.0
    %264 = vmatpush1.xpose.msra.mxu0 %v117
    %265 = vmatprep.subr.mxu0 0.0
    %266 = vmatpush1.xpose.msra.mxu0 %v118
    %267 = vmatprep.subr.mxu0 0.0
    %268 = vmatpush1.xpose.msra.mxu0 %v119
    %269 = vmatprep.subr.mxu0 0.0
    %270 = vmatpush1.xpose.msra.mxu0 %v120
    %271 = vmatprep.subr.mxu0 0.0
    %272 = vmatpush1.xpose.msra.mxu0 %v121
    %273 = vmatprep.subr.mxu0 0.0
    %274 = vmatpush1.xpose.msra.mxu0 %v122
    %275 = vmatprep.subr.mxu0 0.0
    %276 = vmatpush1.xpose.msra.mxu0 %v123
    %277 = vmatprep.mubr.f32.mxu0 0.0
    %278 = vmatmul.mubr.f32.gmra.mrb[0].mxu0 %v56
    %v279 = vpop.f32.mrb[0].mxu0
    %v280 = vadd.f32 0.0, %v279
    %v281 = vpop.f32.mrb[0].mxu0
    %v282 = vadd.f32 0.0, %v281
    %283 = vmatprep.mubr.f32.mxu0 0.0
    %284 = vmatmul.mubr.f32.gmra.mrb[0].mxu0 %v57
    %v285 = vpop.f32.mrb[0].mxu0
    %v286 = vadd.f32 0.0, %v285
    %v287 = vpop.f32.mrb[0].mxu0
    %v288 = vadd.f32 0.0, %v287
    %289 = vmatprep.mubr.f32.mxu0 0.0
    %290 = vmatmul.mubr.f32.gmra.mrb[0].mxu0 %v58
    %v291 = vpop.f32.mrb[0].mxu0
    %v292 = vadd.f32 0.0, %v291
    %v293 = vpop.f32.mrb[0].mxu0
    %v294 = vadd.f32 0.0, %v293
    %295 = vmatprep.mubr.f32.mxu0 0.0
    %296 = vmatmul.mubr.f32.gmra.mrb[0].mxu0 %v59
    %v297 = vpop.f32.mrb[0].mxu0
    %v298 = vadd.f32 0.0, %v297
    %v299 = vpop.f32.mrb[0].mxu0
    %v300 = vadd.f32 0.0, %v299
    %301 = vdwg.mxu0
    %v302 = vmax.f32 %v191, 0.0
    %v303 = vmax.f32 %v193, 0.0
    %v304 = vmax.f32 %v280, 0.0
    %v305 = vmax.f32 %v282, 0.0
    %v306 = vmax.f32 %v197, 0.0
    %v307 = vmax.f32 %v199, 0.0
    %v308 = vmax.f32 %v286, 0.0
    %v309 = vmax.f32 %v288, 0.0
    %v310 = vmax.f32 %v203, 0.0
    %v311 = vmax.f32 %v205, 0.0
    %v312 = vmax.f32 %v292, 0.0
    %v313 = vmax.f32 %v294, 0.0
    %v314 = vmax.f32 %v209, 0.0
    %v315 = vmax.f32 %v211, 0.0
    %v316 = vmax.f32 %v298, 0.0
    %v317 = vmax.f32 %v300, 0.0
    %v318 = vld [vmem:[#allocation7] sm:$0xff]
    %v319 = vld [vmem:[#allocation7 + $0x8] sm:$0xff]
    %v320 = vld [vmem:[#allocation7 + $0x10] sm:$0xff]
    %v321 = vld [vmem:[#allocation7 + $0x18] sm:$0xff]
    %v322 = vld [vmem:[#allocation7 + $0x20] sm:$0xff]
    %v323 = vld [vmem:[#allocation7 + $0x28] sm:$0xff]
    %v324 = vld [vmem:[#allocation7 + $0x30] sm:$0xff]
    %v325 = vld [vmem:[#allocation7 + $0x38] sm:$0xff]
    %v326 = vld [vmem:[#allocation7 + $0x40] sm:$0xff]
    %v327 = vld [vmem:[#allocation7 + $0x48] sm:$0xff]
    %v328 = vld [vmem:[#allocation7 + $0x50] sm:$0xff]
    %v329 = vld [vmem:[#allocation7 + $0x58] sm:$0xff]
    %v330 = vld [vmem:[#allocation7 + $0x60] sm:$0xff]
    %v331 = vld [vmem:[#allocation7 + $0x68] sm:$0xff]
    %v332 = vld [vmem:[#allocation7 + $0x70] sm:$0xff]
    %v333 = vld [vmem:[#allocation7 + $0x78] sm:$0xff]
    %v334 = vld [vmem:[#allocation7 + $0x80] sm:$0xff]
    %v335 = vld [vmem:[#allocation7 + $0x88] sm:$0xff]
    %v336 = vld [vmem:[#allocation7 + $0x90] sm:$0xff]
    %v337 = vld [vmem:[#allocation7 + $0x98] sm:$0xff]
    %v338 = vld [vmem:[#allocation7 + $0xa0] sm:$0xff]
    %v339 = vld [vmem:[#allocation7 + $0xa8] sm:$0xff]
    %v340 = vld [vmem:[#allocation7 + $0xb0] sm:$0xff]
    %v341 = vld [vmem:[#allocation7 + $0xb8] sm:$0xff]
    %v342 = vld [vmem:[#allocation7 + $0xc0] sm:$0xff]
    %v343 = vld [vmem:[#allocation7 + $0xc8] sm:$0xff]
    %v344 = vld [vmem:[#allocation7 + $0xd0] sm:$0xff]
    %v345 = vld [vmem:[#allocation7 + $0xd8] sm:$0xff]
    %v346 = vld [vmem:[#allocation7 + $0xe0] sm:$0xff]
    %v347 = vld [vmem:[#allocation7 + $0xe8] sm:$0xff]
    %v348 = vld [vmem:[#allocation7 + $0xf0] sm:$0xff]
    %v349 = vld [vmem:[#allocation7 + $0xf8] sm:$0xff]
    %v350 = vld [vmem:[#allocation7 + $0x100] sm:$0xff]
    %v351 = vld [vmem:[#allocation7 + $0x108] sm:$0xff]
    %v352 = vld [vmem:[#allocation7 + $0x110] sm:$0xff]
    %v353 = vld [vmem:[#allocation7 + $0x118] sm:$0xff]
    %v354 = vld [vmem:[#allocation7 + $0x120] sm:$0xff]
    %v355 = vld [vmem:[#allocation7 + $0x128] sm:$0xff]
    %v356 = vld [vmem:[#allocation7 + $0x130] sm:$0xff]
    %v357 = vld [vmem:[#allocation7 + $0x138] sm:$0xff]
    %v358 = vld [vmem:[#allocation7 + $0x140] sm:$0xff]
    %v359 = vld [vmem:[#allocation7 + $0x148] sm:$0xff]
    %v360 = vld [vmem:[#allocation7 + $0x150] sm:$0xff]
    %v361 = vld [vmem:[#allocation7 + $0x158] sm:$0xff]
    %v362 = vld [vmem:[#allocation7 + $0x160] sm:$0xff]
    %v363 = vld [vmem:[#allocation7 + $0x168] sm:$0xff]
    %v364 = vld [vmem:[#allocation7 + $0x170] sm:$0xff]
    %v365 = vld [vmem:[#allocation7 + $0x178] sm:$0xff]
    %v366 = vld [vmem:[#allocation7 + $0x180] sm:$0xff]
    %v367 = vld [vmem:[#allocation7 + $0x188] sm:$0xff]
    %v368 = vld [vmem:[#allocation7 + $0x190] sm:$0xff]
    %v369 = vld [vmem:[#allocation7 + $0x198] sm:$0xff]
    %v370 = vld [vmem:[#allocation7 + $0x1a0] sm:$0xff]
    %v371 = vld [vmem:[#allocation7 + $0x1a8] sm:$0xff]
    %v372 = vld [vmem:[#allocation7 + $0x1b0] sm:$0xff]
    %v373 = vld [vmem:[#allocation7 + $0x1b8] sm:$0xff]
    %v374 = vld [vmem:[#allocation7 + $0x1c0] sm:$0xff]
    %v375 = vld [vmem:[#allocation7 + $0x1c8] sm:$0xff]
    %v376 = vld [vmem:[#allocation7 + $0x1d0] sm:$0xff]
    %v377 = vld [vmem:[#allocation7 + $0x1d8] sm:$0xff]
    %v378 = vld [vmem:[#allocation7 + $0x1e0] sm:$0xff]
    %v379 = vld [vmem:[#allocation7 + $0x1e8] sm:$0xff]
    %v380 = vld [vmem:[#allocation7 + $0x1f0] sm:$0xff]
    %v381 = vld [vmem:[#allocation7 + $0x1f8] sm:$0xff]
    %382 = vmatprep.subr.mxu0 %v319
    %383 = vmatpush1.xpose.msra.mxu0 %v318
    %384 = vmatprep.subr.mxu0 %v323
    %385 = vmatpush1.xpose.msra.mxu0 %v322
    %386 = vmatprep.subr.mxu0 %v327
    %387 = vmatpush1.xpose.msra.mxu0 %v326
    %388 = vmatprep.subr.mxu0 %v331
    %389 = vmatpush1.xpose.msra.mxu0 %v330
    %390 = vmatprep.subr.mxu0 %v335
    %391 = vmatpush1.xpose.msra.mxu0 %v334
    %392 = vmatprep.subr.mxu0 %v339
    %393 = vmatpush1.xpose.msra.mxu0 %v338
    %394 = vmatprep.subr.mxu0 %v343
    %395 = vmatpush1.xpose.msra.mxu0 %v342
    %396 = vmatprep.subr.mxu0 %v347
    %397 = vmatpush1.xpose.msra.mxu0 %v346
    %398 = vmatprep.subr.mxu0 %v351
    %399 = vmatpush1.xpose.msra.mxu0 %v350
    %400 = vmatprep.subr.mxu0 %v355
    %401 = vmatpush1.xpose.msra.mxu0 %v354
    %402 = vmatprep.subr.mxu0 %v359
    %403 = vmatpush1.xpose.msra.mxu0 %v358
    %404 = vmatprep.subr.mxu0 %v363
    %405 = vmatpush1.xpose.msra.mxu0 %v362
    %406 = vmatprep.subr.mxu0 %v367
    %407 = vmatpush1.xpose.msra.mxu0 %v366
    %408 = vmatprep.subr.mxu0 %v371
    %409 = vmatpush1.xpose.msra.mxu0 %v370
    %410 = vmatprep.subr.mxu0 %v375
    %411 = vmatpush1.xpose.msra.mxu0 %v374
    %412 = vmatprep.subr.mxu0 %v379
    %413 = vmatpush1.xpose.msra.mxu0 %v378
    %414 = vmatprep.subr.mxu0 0.0
    %415 = vmatpush1.xpose.msra.mxu0 0.0
    %416 = vmatprep.subr.mxu0 0.0
    %417 = vmatpush1.xpose.msra.mxu0 0.0
    %418 = vmatprep.subr.mxu0 0.0
    %419 = vmatpush1.xpose.msra.mxu0 0.0
    %420 = vmatprep.subr.mxu0 0.0
    %421 = vmatpush1.xpose.msra.mxu0 0.0
    %422 = vmatprep.subr.mxu0 0.0
    %423 = vmatpush1.xpose.msra.mxu0 0.0
    %424 = vmatprep.subr.mxu0 0.0
    %425 = vmatpush1.xpose.msra.mxu0 0.0
    %426 = vmatprep.subr.mxu0 0.0
    %427 = vmatpush1.xpose.msra.mxu0 0.0
    %428 = vmatprep.subr.mxu0 0.0
    %429 = vmatpush1.xpose.msra.mxu0 0.0
    %430 = vmatprep.subr.mxu0 0.0
    %431 = vmatpush1.xpose.msra.mxu0 0.0
    %432 = vmatprep.subr.mxu0 0.0
    %433 = vmatpush1.xpose.msra.mxu0 0.0
    %434 = vmatprep.subr.mxu0 0.0
    %435 = vmatpush1.xpose.msra.mxu0 0.0
    %436 = vmatprep.subr.mxu0 0.0
    %437 = vmatpush1.xpose.msra.mxu0 0.0
    %438 = vmatprep.subr.mxu0 0.0
    %439 = vmatpush1.xpose.msra.mxu0 0.0
    %440 = vmatprep.subr.mxu0 0.0
    %441 = vmatpush1.xpose.msra.mxu0 0.0
    %442 = vmatprep.subr.mxu0 0.0
    %443 = vmatpush1.xpose.msra.mxu0 0.0
    %444 = vmatprep.subr.mxu0 0.0
    %445 = vmatpush1.xpose.msra.mxu0 0.0
    %446 = vmatprep.mubr.f32.mxu0 %v303
    %447 = vmatmul.mubr.f32.gmra.mrb[0].mxu0 %v302
    %v448 = vpop.f32.mrb[0].mxu0
    %v449 = vadd.f32 0.0, %v448
    %v450 = vpop.f32.mrb[0].mxu0
    %451 = vmatprep.mubr.f32.mxu0 %v307
    %452 = vmatmul.mubr.f32.gmra.mrb[0].mxu0 %v306
    %v453 = vpop.f32.mrb[0].mxu0
    %v454 = vadd.f32 0.0, %v453
    %v455 = vpop.f32.mrb[0].mxu0
    %456 = vmatprep.mubr.f32.mxu0 %v311
    %457 = vmatmul.mubr.f32.gmra.mrb[0].mxu0 %v310
    %v458 = vpop.f32.mrb[0].mxu0
    %v459 = vadd.f32 0.0, %v458
    %v460 = vpop.f32.mrb[0].mxu0
    %461 = vmatprep.mubr.f32.mxu0 %v315
    %462 = vmatmul.mubr.f32.gmra.mrb[0].mxu0 %v314
    %v463 = vpop.f32.mrb[0].mxu0
    %v464 = vadd.f32 0.0, %v463
    %v465 = vpop.f32.mrb[0].mxu0
    %466 = vdwg.mxu0
    %467 = vmatprep.subr.mxu0 %v321
    %468 = vmatpush1.xpose.msra.mxu0 %v320
    %469 = vmatprep.subr.mxu0 %v325
    %470 = vmatpush1.xpose.msra.mxu0 %v324
    %471 = vmatprep.subr.mxu0 %v329
    %472 = vmatpush1.xpose.msra.mxu0 %v328
    %473 = vmatprep.subr.mxu0 %v333
    %474 = vmatpush1.xpose.msra.mxu0 %v332
    %475 = vmatprep.subr.mxu0 %v337
    %476 = vmatpush1.xpose.msra.mxu0 %v336
    %477 = vmatprep.subr.mxu0 %v341
    %478 = vmatpush1.xpose.msra.mxu0 %v340
    %479 = vmatprep.subr.mxu0 %v345
    %480 = vmatpush1.xpose.msra.mxu0 %v344
    %481 = vmatprep.subr.mxu0 %v349
    %482 = vmatpush1.xpose.msra.mxu0 %v348
    %483 = vmatprep.subr.mxu0 %v353
    %484 = vmatpush1.xpose.msra.mxu0 %v352
    %485 = vmatprep.subr.mxu0 %v357
    %486 = vmatpush1.xpose.msra.mxu0 %v356
    %487 = vmatprep.subr.mxu0 %v361
    %488 = vmatpush1.xpose.msra.mxu0 %v360
    %489 = vmatprep.subr.mxu0 %v365
    %490 = vmatpush1.xpose.msra.mxu0 %v364
    %491 = vmatprep.subr.mxu0 %v369
    %492 = vmatpush1.xpose.msra.mxu0 %v368
    %493 = vmatprep.subr.mxu0 %v373
    %494 = vmatpush1.xpose.msra.mxu0 %v372
    %495 = vmatprep.subr.mxu0 %v377
    %496 = vmatpush1.xpose.msra.mxu0 %v376
    %497 = vmatprep.subr.mxu0 %v381
    %498 = vmatpush1.xpose.msra.mxu0 %v380
    %499 = vmatprep.subr.mxu0 0.0
    %500 = vmatpush1.xpose.msra.mxu0 0.0
    %501 = vmatprep.subr.mxu0 0.0
    %502 = vmatpush1.xpose.msra.mxu0 0.0
    %503 = vmatprep.subr.mxu0 0.0
    %504 = vmatpush1.xpose.msra.mxu0 0.0
    %505 = vmatprep.subr.mxu0 0.0
    %506 = vmatpush1.xpose.msra.mxu0 0.0
    %507 = vmatprep.subr.mxu0 0.0
    %508 = vmatpush1.xpose.msra.mxu0 0.0
    %509 = vmatprep.subr.mxu0 0.0
    %510 = vmatpush1.xpose.msra.mxu0 0.0
    %511 = vmatprep.subr.mxu0 0.0
    %512 = vmatpush1.xpose.msra.mxu0 0.0
    %513 = vmatprep.subr.mxu0 0.0
    %514 = vmatpush1.xpose.msra.mxu0 0.0
    %515 = vmatprep.subr.mxu0 0.0
    %516 = vmatpush1.xpose.msra.mxu0 0.0
    %517 = vmatprep.subr.mxu0 0.0
    %518 = vmatpush1.xpose.msra.mxu0 0.0
    %519 = vmatprep.subr.mxu0 0.0
    %520 = vmatpush1.xpose.msra.mxu0 0.0
    %521 = vmatprep.subr.mxu0 0.0
    %522 = vmatpush1.xpose.msra.mxu0 0.0
    %523 = vmatprep.subr.mxu0 0.0
    %524 = vmatpush1.xpose.msra.mxu0 0.0
    %525 = vmatprep.subr.mxu0 0.0
    %526 = vmatpush1.xpose.msra.mxu0 0.0
    %527 = vmatprep.subr.mxu0 0.0
    %528 = vmatpush1.xpose.msra.mxu0 0.0
    %529 = vmatprep.subr.mxu0 0.0
    %530 = vmatpush1.xpose.msra.mxu0 0.0
    %531 = vmatprep.mubr.f32.mxu0 %v305
    %532 = vmatmul.mubr.f32.gmra.mrb[0].mxu0 %v304
    %v533 = vpop.f32.mrb[0].mxu0
    %v534 = vadd.f32 %v449, %v533
    %v535 = vpop.f32.mrb[0].mxu0
    %536 = vmatprep.mubr.f32.mxu0 %v309
    %537 = vmatmul.mubr.f32.gmra.mrb[0].mxu0 %v308
    %v538 = vpop.f32.mrb[0].mxu0
    %v539 = vadd.f32 %v454, %v538
    %v540 = vpop.f32.mrb[0].mxu0
    %541 = vmatprep.mubr.f32.mxu0 %v313
    %542 = vmatmul.mubr.f32.gmra.mrb[0].mxu0 %v312
    %v543 = vpop.f32.mrb[0].mxu0
    %v544 = vadd.f32 %v459, %v543
    %v545 = vpop.f32.mrb[0].mxu0
    %546 = vmatprep.mubr.f32.mxu0 %v317
    %547 = vmatmul.mubr.f32.gmra.mrb[0].mxu0 %v316
    %v548 = vpop.f32.mrb[0].mxu0
    %v549 = vadd.f32 %v464, %v548
    %v550 = vpop.f32.mrb[0].mxu0
    %551 = vdwg.mxu0
    %552 = vst [vmem:[#allocation8] sm:$0xff] %v534
    %553 = vst [vmem:[#allocation8 + $0x8] sm:$0xff] %v539
    %554 = vst [vmem:[#allocation8 + $0x10] sm:$0xff] %v544
    %555 = vst [vmem:[#allocation8 + $0x18] sm:$0xff] %v549
    // Predicated region
    $region26: #{tpu_custom_call.1} parent=1 // pred_check
      _
    $region27: #{tpu_custom_call.1} parent=1 // pred_check_branch
      %557 = sbr.rel (0) target = $region29
    $region28: #{tpu_custom_call.1} parent=1 // pred_region
      %s559 = ssub.s32 512, 512
      %560 = vsyncadd [#allocation4], %s559
      %s561 = sshll.u32 [#allocation8], 4
      %s562 = int_to_ptr.vmem [resolvable:$true] %s561
      %567 = dma.vmem_to_hbm [thread:$0]  %s562, 512, %s3, [#allocation4], 128, 128, 8
    $region29: #{tpu_custom_call.1} parent=1 // pred_fallthru
      _
    // Predicated region
    $region30: #{tpu_custom_call.1} parent=1 // pred_check
      _
    $region31: #{tpu_custom_call.1} parent=1 // pred_check_branch
      %569 = sbr.rel (0) target = $region33
    $region32: #{tpu_custom_call.1} parent=1 // pred_region
      %570 = dma.done [#allocation4], 512
    $region33: #{tpu_custom_call.1} parent=1 // pred_fallthru
      _
    %571 = vsyncpa [#allocation3], 1
    %572 = vsyncpa [#allocation6], 1
    %573 = vsyncpa [#allocation4], 1

</llo_original>
